<compile_context>
chip_gen: v5e
topology: v5e:2x2
jax: 0.10.0
libtpu: 0.0.40
codegen_flags: <defaults>
</compile_context>

<pallas_src>
import functools

import jax
import jax.numpy as jnp
from jax import lax
from jax.experimental import pallas as pl
from jax.experimental.pallas import tpu as pltpu

BN_EPS = 1e-5
LANE = 128


def _round_up(n, m):
    return (n + m - 1) // m * m


@functools.lru_cache(maxsize=1)
def _vmem_capacity_bytes():
    try:
        return int(pltpu.get_tpu_info().vmem_capacity_bytes)
    except Exception:
        return 64 * 1024 * 1024        # conservative: v7x per-TC VMEM


# --------------------------------------------------------------------------
# Fused single-shot kernel (small / mid batch: everything lives in VMEM)
# --------------------------------------------------------------------------
def _make_fused_kernel(batch, out_size):
    inv_b = 1.0 / float(batch)

    def kernel(x_ref, w1_ref, vec_ref, w2_ref, w3_ref, b3_ref, o_ref):
        b1, g1, be1 = vec_ref[0:1, :], vec_ref[1:2, :], vec_ref[2:3, :]
        b2, g2, be2 = vec_ref[3:4, :], vec_ref[4:5, :], vec_ref[5:6, :]

        def bn_relu(h, g, be):
            # one-pass batch stats: sum + sum-of-squares, clamp var >= 0
            mean = jnp.sum(h, axis=0, keepdims=True) * inv_b
            ex2 = jnp.sum(h * h, axis=0, keepdims=True) * inv_b
            var = jnp.maximum(ex2 - mean * mean, 0.0)
            scale = g * lax.rsqrt(var + BN_EPS)
            shift = be - mean * scale
            return jnp.maximum(h * scale + shift, 0.0)

        h = jnp.dot(x_ref[...], w1_ref[...],
                    preferred_element_type=jnp.float32) + b1
        a = bn_relu(h, g1, be1).astype(w2_ref.dtype)
        h = jnp.dot(a, w2_ref[...],
                    preferred_element_type=jnp.float32) + b2
        a = bn_relu(h, g2, be2).astype(w3_ref.dtype)
        z = jnp.dot(a, w3_ref[...],
                    preferred_element_type=jnp.float32) + b3_ref[...]
        # store at the true output width (no padded HBM write / wrapper slice)
        o_ref[...] = jax.nn.sigmoid(z[:, :out_size])

    return kernel


def _forward_fused(x_lo, pp, out_size):
    B = x_lo.shape[0]
    cap = _vmem_capacity_bytes()
    vmem_limit = min(cap * 3 // 4, 100 * 1024 * 1024)
    vmem = pl.BlockSpec(memory_space=pltpu.MemorySpace.VMEM)
    args = (x_lo, pp["w1"], pp["vecs"], pp["w2"], pp["w3"], pp["b3"])
    return pl.pallas_call(
        _make_fused_kernel(B, out_size),
        out_shape=jax.ShapeDtypeStruct((B, out_size), jnp.float32),
        in_specs=[vmem] * len(args),
        out_specs=vmem,
        compiler_params=pltpu.CompilerParams(vmem_limit_bytes=int(vmem_limit)),
    )(*args)


# --------------------------------------------------------------------------
# Batch-tiled three-pass path (large batch, full-batch BN via partial sums,
# hidden activations recomputed instead of round-tripped through HBM)
# --------------------------------------------------------------------------
def _make_stage_a_kernel(tb, valid_rows):
    """fc1 tile -> per-tile BN1 partial [sum, sumsq] (stats only)."""
    def kernel(x_ref, w1_ref, b1_ref, s_ref, ss_ref):
        h = jnp.dot(x_ref[...], w1_ref[...],
                    preferred_element_type=jnp.float32) + b1_ref[...]
        if valid_rows is not None:       # mask zero-padded batch rows
            row = pl.program_id(0) * tb + lax.broadcasted_iota(
                jnp.int32, h.shape, 0)
            h = jnp.where(row < valid_rows, h, 0.0)
        s_ref[...] = jnp.sum(h, axis=0, keepdims=True)[None]
        ss_ref[...] = jnp.sum(h * h, axis=0, keepdims=True)[None]
    return kernel


def _make_stage_b_kernel(tb, valid_rows):
    """recompute fc1 -> BN1 -> ReLU -> fc2 -> per-tile BN2 partial stats."""
    def kernel(x_ref, w1_ref, w2_ref, vec_ref, s_ref, ss_ref):
        b1, sc1, sh1, b2 = (vec_ref[0:1, :], vec_ref[1:2, :],
                            vec_ref[2:3, :], vec_ref[3:4, :])
        h = jnp.dot(x_ref[...], w1_ref[...],
                    preferred_element_type=jnp.float32) + b1
        a = jnp.maximum(h * sc1 + sh1, 0.0).astype(w2_ref.dtype)
        h2 = jnp.dot(a, w2_ref[...],
                     preferred_element_type=jnp.float32) + b2
        if valid_rows is not None:
            row = pl.program_id(0) * tb + lax.broadcasted_iota(
                jnp.int32, h2.shape, 0)
            h2 = jnp.where(row < valid_rows, h2, 0.0)
        s_ref[...] = jnp.sum(h2, axis=0, keepdims=True)[None]
        ss_ref[...] = jnp.sum(h2 * h2, axis=0, keepdims=True)[None]
    return kernel


def _make_stage_c_kernel(out_size):
    """recompute full chain -> sigmoid -> un-padded output tile."""
    def kernel(x_ref, w1_ref, w2_ref, w3_ref, vec_ref, b3_ref, o_ref):
        b1, sc1, sh1 = vec_ref[0:1, :], vec_ref[1:2, :], vec_ref[2:3, :]
        b2, sc2, sh2 = vec_ref[3:4, :], vec_ref[4:5, :], vec_ref[5:6, :]
        h = jnp.dot(x_ref[...], w1_ref[...],
                    preferred_element_type=jnp.float32) + b1
        a = jnp.maximum(h * sc1 + sh1, 0.0).astype(w2_ref.dtype)
        h2 = jnp.dot(a, w2_ref[...],
                     preferred_element_type=jnp.float32) + b2
        a2 = jnp.maximum(h2 * sc2 + sh2, 0.0).astype(w3_ref.dtype)
        z = jnp.dot(a2, w3_ref[...],
                    preferred_element_type=jnp.float32) + b3_ref[...]
        o_ref[...] = jax.nn.sigmoid(z[:, :out_size])
    return kernel


def _bn_fold(s, ss, n, gamma, beta):
    """Fold full-batch sums + BN affine into per-feature scale/shift."""
    mean = s / n
    var = jnp.maximum(ss / n - mean * mean, 0.0)   # clamp f32 cancellation
    scale = gamma * lax.rsqrt(var + BN_EPS)
    shift = beta - mean * scale
    return scale, shift


def _forward_tiled(x_lo, pp, out_size, tb):
    B, in_size = x_lo.shape
    hp = pp["w1"].shape[1]
    op = pp["w3"].shape[1]
    nb = pl.cdiv(B, tb)
    b_pad = nb * tb
    valid_rows = None if b_pad == B else B
    if b_pad != B:
        x_lo = jnp.pad(x_lo, ((0, b_pad - B), (0, 0)))

    vecs = pp["vecs"]                         # (6, hp) f32: b1 g1 be1 b2 g2 be2
    par = pltpu.CompilerParams(dimension_semantics=("parallel",))
    stats_shape = [jax.ShapeDtypeStruct((nb, 1, hp), jnp.float32)] * 2
    stats_spec = [pl.BlockSpec((1, 1, hp), lambda i: (i, 0, 0))] * 2
    x_spec = pl.BlockSpec((tb, in_size), lambda i: (i, 0))
    w1_spec = pl.BlockSpec((in_size, hp), lambda i: (0, 0))
    w2_spec = pl.BlockSpec((hp, hp), lambda i: (0, 0))

    # ---- pass A: fc1 -> BN1 partial sums (no (B, hp) HBM round-trip) --------
    s1, ss1 = pl.pallas_call(
        _make_stage_a_kernel(tb, valid_rows),
        grid=(nb,),
        in_specs=[x_spec, w1_spec, pl.BlockSpec((1, hp), lambda i: (0, 0))],
        out_specs=stats_spec,
        out_shape=stats_shape,
        compiler_params=par,
    )(x_lo, pp["w1"], vecs[0:1, :])

    scale1, shift1 = _bn_fold(jnp.sum(s1, axis=(0, 1)),
                              jnp.sum(ss1, axis=(0, 1)),
                              float(B), vecs[1], vecs[2])
    vec_b = jnp.stack([vecs[0], scale1, shift1, vecs[3]], axis=0)      # (4, hp)

    # ---- pass B: recompute fc1, BN1+ReLU, fc2 -> BN2 partial sums -----------
    s2, ss2 = pl.pallas_call(
        _make_stage_b_kernel(tb, valid_rows),
        grid=(nb,),
        in_specs=[x_spec, w1_spec, w2_spec,
                  pl.BlockSpec((4, hp), lambda i: (0, 0))],
        out_specs=stats_spec,
        out_shape=stats_shape,
        compiler_params=par,
    )(x_lo, pp["w1"], pp["w2"], vec_b)

    scale2, shift2 = _bn_fold(jnp.sum(s2, axis=(0, 1)),
                              jnp.sum(ss2, axis=(0, 1)),
                              float(B), vecs[4], vecs[5])
    vec_c = jnp.stack([vecs[0], scale1, shift1, vecs[3], scale2, shift2], axis=0)

    # ---- pass C: recompute full chain, sigmoid, write un-padded output ------
    out = pl.pallas_call(
        _make_stage_c_kernel(out_size),
        grid=(nb,),
        in_specs=[x_spec, w1_spec, w2_spec,
                  pl.BlockSpec((hp, op), lambda i: (0, 0)),
                  pl.BlockSpec((6, hp), lambda i: (0, 0)),
                  pl.BlockSpec((1, op), lambda i: (0, 0))],
        out_specs=pl.BlockSpec((tb, out_size), lambda i: (i, 0)),
        out_shape=jax.ShapeDtypeStruct((b_pad, out_size), jnp.float32),
        compiler_params=par,
    )(x_lo, pp["w1"], pp["w2"], pp["w3"], vec_c, pp["b3"])
    return out[:B] if b_pad != B else out


# --------------------------------------------------------------------------
# Public wrapper
# --------------------------------------------------------------------------
def _fused_vmem_estimate(B, in_size, hp, op, act_bytes):
    per_row = in_size * act_bytes + 3 * hp * 4 + hp * act_bytes + 2 * op * 4
    weights = (in_size + hp + op) * hp * act_bytes + 16 * hp * 4
    return B * per_row + weights + (2 << 20)


def _pick_tile(B):
    for tb in (2048, 1024, 512, 256):
        if B >= 2 * tb:
            return tb
    return 128


@functools.partial(jax.jit, static_argnames=("out_size", "batch_tile"))
def action_predictor_bn(x, pp, *, out_size, batch_tile=None):
    """x: (B, input_size) f32. pp: prepared/padded params (see prepare_params)."""
    B, in_size = x.shape
    hp = pp["w1"].shape[1]
    op = pp["w3"].shape[1]
    x_lo = x.astype(pp["w1"].dtype)          # bf16 (or f32) once, reused by all passes
    if batch_tile is None:
        act_bytes = jnp.dtype(pp["w1"].dtype).itemsize
        need = _fused_vmem_estimate(B, in_size, hp, op, act_bytes)
        if need > _vmem_capacity_bytes() // 2:     # VMEM-derived fused threshold
            batch_tile = _pick_tile(B)
    if batch_tile is None:
        return _forward_fused(x_lo, pp, out_size)
    assert batch_tile % 8 == 0
    return _forward_tiled(x_lo, pp, out_size, batch_tile)


# --------------------------------------------------------------------------
# Parameter construction / packing (wrapper-side layout plumbing)
# --------------------------------------------------------------------------
def prepare_params(p, matmul_dtype=jnp.bfloat16):
    """Pad hidden/output to lane width, pack per-feature vectors, cast weights."""
    in_size, hidden = p["w1"].shape
    out_size = p["w3"].shape[1]
    hp = max(_round_up(hidden, LANE), LANE)
    op = max(_round_up(out_size, LANE), LANE)

    def pad2(a, rows, cols):
        return jnp.pad(a, ((0, rows - a.shape[0]), (0, cols - a.shape[1])))

    vecs = jnp.concatenate([
        pad2(p["b1"], 1, hp), pad2(p["g1"], 1, hp), pad2(p["beta1"], 1, hp),
        pad2(p["b2"], 1, hp), pad2(p["g2"], 1, hp), pad2(p["beta2"], 1, hp),
    ], axis=0).astype(jnp.float32)           # (6, hp); gamma pad = 0 keeps pads inert
    return {
        "w1": pad2(p["w1"], in_size, hp).astype(matmul_dtype),
        "w2": pad2(p["w2"], hp, hp).astype(matmul_dtype),
        "w3": pad2(p["w3"], hp, op).astype(matmul_dtype),
        "b3": pad2(p["b3"], 1, op).astype(jnp.float32),
        "vecs": vecs,
    }


def init_params(key, input_size, output_size, hidden=64):
    """Deterministic synthetic init (mirrors the PyTorch module shapes)."""
    ks = jax.random.split(key, 6)

    def lin(kw, kb, fan_in, fan_out):
        bound = 1.0 / jnp.sqrt(fan_in)
        w = jax.random.uniform(kw, (fan_in, fan_out), jnp.float32, -bound, bound)
        b = jax.random.uniform(kb, (1, fan_out), jnp.float32, -bound, bound)
        return w, b

    w1, b1 = lin(ks[0], ks[1], input_size, hidden)
    w2, b2 = lin(ks[2], ks[3], hidden, hidden)
    w3, b3 = lin(ks[4], ks[5], hidden, output_size)
    return {
        "w1": w1, "b1": b1,
        "g1": jnp.ones((1, hidden), jnp.float32),
        "beta1": jnp.zeros((1, hidden), jnp.float32),
        "w2": w2, "b2": b2,
        "g2": jnp.ones((1, hidden), jnp.float32),
        "beta2": jnp.zeros((1, hidden), jnp.float32),
        "w3": w3, "b3": b3,
    }


def _reference(x, p):
    """Pure-JAX f32 reference (training-mode BN), on the unpadded params."""
    def bn(h, g, b):
        mu = jnp.mean(h, axis=0, keepdims=True)
        var = jnp.mean((h - mu) ** 2, axis=0, keepdims=True)
        return (h - mu) / jnp.sqrt(var + BN_EPS) * g + b

    h = jnp.maximum(bn(x @ p["w1"] + p["b1"], p["g1"], p["beta1"]), 0.0)
    h = jnp.maximum(bn(h @ p["w2"] + p["b2"], p["g2"], p["beta2"]), 0.0)
    return jax.nn.sigmoid(h @ p["w3"] + p["b3"])


if __name__ == "__main__":
    key = jax.random.PRNGKey(0)
    k_p, k1, k2, k3 = jax.random.split(key, 4)

    input_size, output_size = 32, 16
    params = init_params(k_p, input_size, output_size)
    pp_bf16 = prepare_params(params, matmul_dtype=jnp.bfloat16)   # fast path
    pp_f32 = prepare_params(params, matmul_dtype=jnp.float32)     # tight-check path

    # 1) small batch -> fused single-shot kernel, f32 matmuls (tight check)
    x = jax.random.normal(k1, (8, input_size), jnp.float32)
    ref = _reference(x, params)
    out = jax.block_until_ready(action_predictor_bn(x, pp_f32, out_size=output_size))
    assert out.shape == (8, output_size)
    err = float(jnp.max(jnp.abs(out - ref)))
    assert err < 5e-4, f"fused f32 max abs err {err}"

    # 2) small batch, bf16 matmuls (default fast path, looser check)
    out_bf = jax.block_until_ready(action_predictor_bn(x, pp_bf16, out_size=output_size))
    err_bf = float(jnp.max(jnp.abs(out_bf - ref)))
    assert err_bf < 5e-2, f"fused bf16 max abs err {err_bf}"

    # 3) tiled three-pass path, batch divisible by tile, bf16 matmuls
    x2 = jax.random.normal(k2, (1024, input_size), jnp.float32)
    ref2 = _reference(x2, params)
    out2 = jax.block_until_ready(
        action_predictor_bn(x2, pp_bf16, out_size=output_size, batch_tile=256))
    assert out2.shape == (1024, output_size)
    err2 = float(jnp.max(jnp.abs(out2 - ref2)))
    assert err2 < 5e-2, f"tiled bf16 max abs err {err2}"

    # 4) tiled path with batch padding + in-kernel row masking (B % tile != 0)
    x3 = jax.random.normal(k3, (600, input_size), jnp.float32)
    ref3 = _reference(x3, params)
    out3 = jax.block_until_ready(
        action_predictor_bn(x3, pp_f32, out_size=output_size, batch_tile=256))
    assert out3.shape == (600, output_size)
    err3 = float(jnp.max(jnp.abs(out3 - ref3)))
    assert err3 < 5e-4, f"tiled padded f32 max abs err {err3}"

    print("KERNEL_OK")
</pallas_src>

<mosaic_0001>
module attributes {stable_mosaic.version = 11 : i64} {
  func.func @kernel(%arg0: memref<8x32xf32, #tpu.memory_space<vmem>>, %arg1: memref<32x128xf32, #tpu.memory_space<vmem>>, %arg2: memref<6x128xf32, #tpu.memory_space<vmem>>, %arg3: memref<128x128xf32, #tpu.memory_space<vmem>>, %arg4: memref<128x128xf32, #tpu.memory_space<vmem>>, %arg5: memref<1x128xf32, #tpu.memory_space<vmem>>, %arg6: memref<8x16xf32, #tpu.memory_space<vmem>>) attributes {dimension_semantics = [], scalar_prefetch = 0 : i64, scratch_operands = 0 : i64, tpu.core_type = #tpu.core_type<tc>} {
    %c0 = arith.constant 0 : index
    %c0_0 = arith.constant 0 : index
    %0 = vector.load %arg2[%c0, %c0_0] : memref<6x128xf32, #tpu.memory_space<vmem>>, vector<1x128xf32>
    %c1 = arith.constant 1 : index
    %c0_1 = arith.constant 0 : index
    %1 = vector.load %arg2[%c1, %c0_1] : memref<6x128xf32, #tpu.memory_space<vmem>>, vector<1x128xf32>
    %c2 = arith.constant 2 : index
    %c0_2 = arith.constant 0 : index
    %2 = vector.load %arg2[%c2, %c0_2] : memref<6x128xf32, #tpu.memory_space<vmem>>, vector<1x128xf32>
    %c3 = arith.constant 3 : index
    %c0_3 = arith.constant 0 : index
    %3 = vector.load %arg2[%c3, %c0_3] : memref<6x128xf32, #tpu.memory_space<vmem>>, vector<1x128xf32>
    %c4 = arith.constant 4 : index
    %c0_4 = arith.constant 0 : index
    %4 = vector.load %arg2[%c4, %c0_4] : memref<6x128xf32, #tpu.memory_space<vmem>>, vector<1x128xf32>
    %c5 = arith.constant 5 : index
    %c0_5 = arith.constant 0 : index
    %5 = vector.load %arg2[%c5, %c0_5] : memref<6x128xf32, #tpu.memory_space<vmem>>, vector<1x128xf32>
    %c0_6 = arith.constant 0 : index
    %c0_7 = arith.constant 0 : index
    %6 = vector.load %arg0[%c0_6, %c0_7] : memref<8x32xf32, #tpu.memory_space<vmem>>, vector<8x32xf32>
    %c0_8 = arith.constant 0 : index
    %c0_9 = arith.constant 0 : index
    %7 = vector.load %arg1[%c0_8, %c0_9] : memref<32x128xf32, #tpu.memory_space<vmem>>, vector<32x128xf32>
    %cst = arith.constant dense<0.000000e+00> : vector<8x128xf32>
    %8 = tpu.matmul %6, %7, %cst {dimension_numbers = #tpu.dot_dimension_numbers<[1], [0], [0], [1], [0, 0, 1, 1], [], []>} : vector<8x32xf32>, vector<32x128xf32>, vector<8x128xf32> -> vector<8x128xf32>
    %9 = vector.broadcast %0 : vector<1x128xf32> to vector<8x128xf32>
    %10 = arith.addf %8, %9 : vector<8x128xf32>
    %cst_10 = arith.constant dense<0.000000e+00> : vector<128xf32>
    %11 = vector.multi_reduction <add>, %10, %cst_10 [0] : vector<8x128xf32> to vector<128xf32>
    %12 = vector.shape_cast %11 : vector<128xf32> to vector<1x128xf32>
    %cst_11 = arith.constant 1.250000e-01 : f32
    %13 = vector.broadcast %cst_11 : f32 to vector<1x128xf32>
    %14 = arith.mulf %12, %13 : vector<1x128xf32>
    %15 = arith.mulf %10, %10 : vector<8x128xf32>
    %cst_12 = arith.constant dense<0.000000e+00> : vector<128xf32>
    %16 = vector.multi_reduction <add>, %15, %cst_12 [0] : vector<8x128xf32> to vector<128xf32>
    %17 = vector.shape_cast %16 : vector<128xf32> to vector<1x128xf32>
    %cst_13 = arith.constant 1.250000e-01 : f32
    %18 = vector.broadcast %cst_13 : f32 to vector<1x128xf32>
    %19 = arith.mulf %17, %18 : vector<1x128xf32>
    %20 = arith.mulf %14, %14 : vector<1x128xf32>
    %21 = arith.subf %19, %20 : vector<1x128xf32>
    %cst_14 = arith.constant 0.000000e+00 : f32
    %22 = vector.broadcast %cst_14 : f32 to vector<1x128xf32>
    %23 = arith.maximumf %21, %22 : vector<1x128xf32>
    %cst_15 = arith.constant 9.99999974E-6 : f32
    %24 = vector.broadcast %cst_15 : f32 to vector<1x128xf32>
    %25 = arith.addf %23, %24 : vector<1x128xf32>
    %26 = math.rsqrt %25 : vector<1x128xf32>
    %27 = arith.mulf %1, %26 : vector<1x128xf32>
    %28 = arith.mulf %14, %27 : vector<1x128xf32>
    %29 = arith.subf %2, %28 : vector<1x128xf32>
    %30 = vector.broadcast %27 : vector<1x128xf32> to vector<8x128xf32>
    %31 = arith.mulf %10, %30 : vector<8x128xf32>
    %32 = vector.broadcast %29 : vector<1x128xf32> to vector<8x128xf32>
    %33 = arith.addf %31, %32 : vector<8x128xf32>
    %cst_16 = arith.constant 0.000000e+00 : f32
    %34 = vector.broadcast %cst_16 : f32 to vector<8x128xf32>
    %35 = arith.maximumf %33, %34 : vector<8x128xf32>
    %c0_17 = arith.constant 0 : index
    %c0_18 = arith.constant 0 : index
    %36 = vector.load %arg3[%c0_17, %c0_18] : memref<128x128xf32, #tpu.memory_space<vmem>>, vector<128x128xf32>
    %cst_19 = arith.constant dense<0.000000e+00> : vector<8x128xf32>
    %37 = tpu.matmul %35, %36, %cst_19 {dimension_numbers = #tpu.dot_dimension_numbers<[1], [0], [0], [1], [0, 0, 1, 1], [], []>} : vector<8x128xf32>, vector<128x128xf32>, vector<8x128xf32> -> vector<8x128xf32>
    %38 = vector.broadcast %3 : vector<1x128xf32> to vector<8x128xf32>
    %39 = arith.addf %37, %38 : vector<8x128xf32>
    %cst_20 = arith.constant dense<0.000000e+00> : vector<128xf32>
    %40 = vector.multi_reduction <add>, %39, %cst_20 [0] : vector<8x128xf32> to vector<128xf32>
    %41 = vector.shape_cast %40 : vector<128xf32> to vector<1x128xf32>
    %cst_21 = arith.constant 1.250000e-01 : f32
    %42 = vector.broadcast %cst_21 : f32 to vector<1x128xf32>
    %43 = arith.mulf %41, %42 : vector<1x128xf32>
    %44 = arith.mulf %39, %39 : vector<8x128xf32>
    %cst_22 = arith.constant dense<0.000000e+00> : vector<128xf32>
    %45 = vector.multi_reduction <add>, %44, %cst_22 [0] : vector<8x128xf32> to vector<128xf32>
    %46 = vector.shape_cast %45 : vector<128xf32> to vector<1x128xf32>
    %cst_23 = arith.constant 1.250000e-01 : f32
    %47 = vector.broadcast %cst_23 : f32 to vector<1x128xf32>
    %48 = arith.mulf %46, %47 : vector<1x128xf32>
    %49 = arith.mulf %43, %43 : vector<1x128xf32>
    %50 = arith.subf %48, %49 : vector<1x128xf32>
    %cst_24 = arith.constant 0.000000e+00 : f32
    %51 = vector.broadcast %cst_24 : f32 to vector<1x128xf32>
    %52 = arith.maximumf %50, %51 : vector<1x128xf32>
    %cst_25 = arith.constant 9.99999974E-6 : f32
    %53 = vector.broadcast %cst_25 : f32 to vector<1x128xf32>
    %54 = arith.addf %52, %53 : vector<1x128xf32>
    %55 = math.rsqrt %54 : vector<1x128xf32>
    %56 = arith.mulf %4, %55 : vector<1x128xf32>
    %57 = arith.mulf %43, %56 : vector<1x128xf32>
    %58 = arith.subf %5, %57 : vector<1x128xf32>
    %59 = vector.broadcast %56 : vector<1x128xf32> to vector<8x128xf32>
    %60 = arith.mulf %39, %59 : vector<8x128xf32>
    %61 = vector.broadcast %58 : vector<1x128xf32> to vector<8x128xf32>
    %62 = arith.addf %60, %61 : vector<8x128xf32>
    %cst_26 = arith.constant 0.000000e+00 : f32
    %63 = vector.broadcast %cst_26 : f32 to vector<8x128xf32>
    %64 = arith.maximumf %62, %63 : vector<8x128xf32>
    %c0_27 = arith.constant 0 : index
    %c0_28 = arith.constant 0 : index
    %65 = vector.load %arg4[%c0_27, %c0_28] : memref<128x128xf32, #tpu.memory_space<vmem>>, vector<128x128xf32>
    %cst_29 = arith.constant dense<0.000000e+00> : vector<8x128xf32>
    %66 = tpu.matmul %64, %65, %cst_29 {dimension_numbers = #tpu.dot_dimension_numbers<[1], [0], [0], [1], [0, 0, 1, 1], [], []>} : vector<8x128xf32>, vector<128x128xf32>, vector<8x128xf32> -> vector<8x128xf32>
    %c0_30 = arith.constant 0 : index
    %c0_31 = arith.constant 0 : index
    %67 = vector.load %arg5[%c0_30, %c0_31] : memref<1x128xf32, #tpu.memory_space<vmem>>, vector<1x128xf32>
    %68 = vector.broadcast %67 : vector<1x128xf32> to vector<8x128xf32>
    %69 = arith.addf %66, %68 : vector<8x128xf32>
    %70 = vector.extract_strided_slice %69 {offsets = [0, 0], sizes = [8, 16], strides = [1, 1]} : vector<8x128xf32> to vector<8x16xf32>
    %71 = arith.negf %70 : vector<8x16xf32>
    %72 = math.exp %71 : vector<8x16xf32>
    %cst_32 = arith.constant 1.000000e+00 : f32
    %73 = vector.broadcast %cst_32 : f32 to vector<8x16xf32>
    %74 = arith.addf %73, %72 : vector<8x16xf32>
    %75 = arith.divf %73, %74 : vector<8x16xf32>
    %c0_33 = arith.constant 0 : index
    %c0_34 = arith.constant 0 : index
    %76 = vector.load %arg6[%c0_33, %c0_34] : memref<8x16xf32, #tpu.memory_space<vmem>>, vector<8x16xf32>
    tpu.vector_store %arg6[%c0_33, %c0_34], %75 {strides = array<i32>} : memref<8x16xf32, #tpu.memory_space<vmem>>, vector<8x16xf32>,
    return
  }
}

</mosaic_0001>

<llo_original>
// kernel: action_predictor_bn.1
$region0: #{action_predictor_bn.1}
  #allocation0 [shape = 'u32[]', space=smem, size = 0x4, offset = 0x4, fixed_abs, tag = 'smem constant byte address 0x4 - core index']
  #allocation1 [shape = 'u32[72,128]{1,0:T(1,128)}', space=vmem, size = 0x9000, scoped, tag = 'internal scratch']
  %s0 = inlined_call_operand.hbm [shape: f32[8,32], index: 0, kind: input, shape index: {}]
  %s1 = inlined_call_operand.hbm [shape: f32[32,128], index: 1, kind: input, shape index: {}]
  %s2 = inlined_call_operand.hbm [shape: f32[6,128], index: 2, kind: input, shape index: {}]
  %s3 = inlined_call_operand.hbm [shape: f32[128,128], index: 3, kind: input, shape index: {}]
  %s4 = inlined_call_operand.hbm [shape: f32[128,128], index: 4, kind: input, shape index: {}]
  %s5 = inlined_call_operand.hbm [shape: f32[1,128], index: 5, kind: input, shape index: {}]
  %s6 = inlined_call_operand.hbm [shape: f32[8,16], index: 6, kind: output, shape index: {}]
  %s7 = sld [smem:[#allocation0]]
  $region58: #{action_predictor_bn.1} parent=0
    _
  %s9 = ssub.s32 1, %s7
  %s10 = scalar_select 0, %s9, %s7
  $region1: #{action_predictor_bn.1} parent=0
    #allocation2 [shape = 'u8[4096]{0}', space=vmem, size = 0x1000, scoped, tag = 'input window, operand 0, single buffered']
    #allocation3 [shape = 's32[1]{0}', space=sflag, size = 0x4, scoped, tag = 'scoped memory for action_predictor_bn.1']
    #allocation4 [shape = 's32[1]{0}', space=sflag, size = 0x4, scoped, tag = 'scoped memory for action_predictor_bn.1']
    #allocation5 [shape = 'u8[16384]{0}', space=vmem, size = 0x4000, scoped, tag = 'input window, operand 1, single buffered']
    #allocation6 [shape = 's32[1]{0}', space=sflag, size = 0x4, scoped, tag = 'scoped memory for action_predictor_bn.1']
    #allocation7 [shape = 'u8[4096]{0}', space=vmem, size = 0x1000, scoped, tag = 'input window, operand 2, single buffered']
    #allocation8 [shape = 'u8[65536]{0}', space=vmem, size = 0x10000, scoped, tag = 'input window, operand 3, single buffered']
    #allocation9 [shape = 's32[1]{0}', space=sflag, size = 0x4, scoped, tag = 'scoped memory for action_predictor_bn.1']
    #allocation10 [shape = 'u8[65536]{0}', space=vmem, size = 0x10000, scoped, tag = 'input window, operand 4, single buffered']
    #allocation11 [shape = 'u8[512]{0}', space=vmem, size = 0x400, scoped, tag = 'input window, operand 5, single buffered']
    #allocation12 [shape = 's32[1]{0}', space=sflag, size = 0x4, scoped, tag = 'scoped memory for action_predictor_bn.1']
    #allocation13 [shape = 'u8[4096]{0}', space=vmem, size = 0x1000, scoped, tag = 'output window, operand 0, single buffered']
    %11 = vsyncpa [#allocation3], 0
    %12 = vsyncpa [#allocation6], 0
    %13 = vsyncpa [#allocation9], 0
    %14 = vsyncpa [#allocation12], 0
    %15 = vsyncpa [#allocation4], 0
    // Predicated region
    $region2: #{action_predictor_bn.1} parent=1 // pred_check
      _
    $region3: #{action_predictor_bn.1} parent=1 // pred_check_branch
      %17 = sbr.rel (0) target = $region5
    $region4: #{action_predictor_bn.1} parent=1 // pred_region
      %19 = vsyncadd [#allocation3], 0
      %s21 = sshll.u32 %s0, 4
      %s22 = int_to_ptr.hbm [resolvable:$true] %s21
      %s23 = sshll.u32 [#allocation2], 4
      %s24 = int_to_ptr.vmem [resolvable:$true] %s23
      %26 = dma.hbm_to_vmem [thread:$0]  %s22, 128, %s24, [#allocation3]
    $region5: #{action_predictor_bn.1} parent=1 // pred_fallthru
      _
    // Predicated region
    $region6: #{action_predictor_bn.1} parent=1 // pred_check
      _
    $region7: #{action_predictor_bn.1} parent=1 // pred_check_branch
      %28 = sbr.rel (0) target = $region9
    $region8: #{action_predictor_bn.1} parent=1 // pred_region
      %30 = vsyncadd [#allocation6], 0
      %s31 = sshll.u32 %s1, 4
      %s32 = int_to_ptr.hbm [resolvable:$true] %s31
      %s33 = sshll.u32 [#allocation5], 4
      %s34 = int_to_ptr.vmem [resolvable:$true] %s33
      %39 = dma.hbm_to_vmem [thread:$0]  %s32, 512, %s34, [#allocation6], 128, 128, 8
    $region9: #{action_predictor_bn.1} parent=1 // pred_fallthru
      _
    // Predicated region
    $region10: #{action_predictor_bn.1} parent=1 // pred_check
      _
    $region11: #{action_predictor_bn.1} parent=1 // pred_check_branch
      %41 = sbr.rel (0) target = $region13
    $region12: #{action_predictor_bn.1} parent=1 // pred_region
      %43 = vsyncadd [#allocation6], 0
      %s45 = sshll.u32 %s2, 4
      %s46 = int_to_ptr.hbm [resolvable:$true] %s45
      %s47 = sshll.u32 [#allocation7], 4
      %s48 = int_to_ptr.vmem [resolvable:$true] %s47
      %50 = dma.hbm_to_vmem [thread:$0]  %s46, 128, %s48, [#allocation6]
    $region13: #{action_predictor_bn.1} parent=1 // pred_fallthru
      _
    // Predicated region
    $region14: #{action_predictor_bn.1} parent=1 // pred_check
      _
    $region15: #{action_predictor_bn.1} parent=1 // pred_check_branch
      %52 = sbr.rel (0) target = $region17
    $region16: #{action_predictor_bn.1} parent=1 // pred_region
      %54 = vsyncadd [#allocation9], 0
      %s55 = sshll.u32 %s3, 4
      %s56 = int_to_ptr.hbm [resolvable:$true] %s55
      %s57 = sshll.u32 [#allocation8], 4
      %s58 = int_to_ptr.vmem [resolvable:$true] %s57
      %63 = dma.hbm_to_vmem [thread:$0]  %s56, 2048, %s58, [#allocation9], 128, 128, 8
    $region17: #{action_predictor_bn.1} parent=1 // pred_fallthru
      _
    // Predicated region
    $region18: #{action_predictor_bn.1} parent=1 // pred_check
      _
    $region19: #{action_predictor_bn.1} parent=1 // pred_check_branch
      %65 = sbr.rel (0) target = $region21
    $region20: #{action_predictor_bn.1} parent=1 // pred_region
      %67 = vsyncadd [#allocation9], 0
      %s68 = sshll.u32 %s4, 4
      %s69 = int_to_ptr.hbm [resolvable:$true] %s68
      %s70 = sshll.u32 [#allocation10], 4
      %s71 = int_to_ptr.vmem [resolvable:$true] %s70
      %76 = dma.hbm_to_vmem [thread:$0]  %s69, 2048, %s71, [#allocation9], 128, 128, 8
    $region21: #{action_predictor_bn.1} parent=1 // pred_fallthru
      _
    // Predicated region
    $region22: #{action_predictor_bn.1} parent=1 // pred_check
      _
    $region23: #{action_predictor_bn.1} parent=1 // pred_check_branch
      %78 = sbr.rel (0) target = $region25
    $region24: #{action_predictor_bn.1} parent=1 // pred_region
      %80 = vsyncadd [#allocation12], 0
      %s82 = sshll.u32 %s5, 4
      %s83 = int_to_ptr.hbm [resolvable:$true] %s82
      %s84 = sshll.u32 [#allocation11], 4
      %s85 = int_to_ptr.vmem [resolvable:$true] %s84
      %87 = dma.hbm_to_vmem [thread:$0]  %s83, 16, %s85, [#allocation12]
    $region25: #{action_predictor_bn.1} parent=1 // pred_fallthru
      _
    // Predicated region
    $region26: #{action_predictor_bn.1} parent=1 // pred_check
      _
    $region27: #{action_predictor_bn.1} parent=1 // pred_check_branch
      %89 = sbr.rel (0) target = $region29
    $region28: #{action_predictor_bn.1} parent=1 // pred_region
      %91 = dma.done [#allocation3], 128
    $region29: #{action_predictor_bn.1} parent=1 // pred_fallthru
      _
    // Predicated region
    $region30: #{action_predictor_bn.1} parent=1 // pred_check
      _
    $region31: #{action_predictor_bn.1} parent=1 // pred_check_branch
      %93 = sbr.rel (0) target = $region33
    $region32: #{action_predictor_bn.1} parent=1 // pred_region
      %95 = dma.done [#allocation6], 512
    $region33: #{action_predictor_bn.1} parent=1 // pred_fallthru
      _
    // Predicated region
    $region34: #{action_predictor_bn.1} parent=1 // pred_check
      _
    $region35: #{action_predictor_bn.1} parent=1 // pred_check_branch
      %97 = sbr.rel (0) target = $region37
    $region36: #{action_predictor_bn.1} parent=1 // pred_region
      %99 = dma.done [#allocation6], 128
    $region37: #{action_predictor_bn.1} parent=1 // pred_fallthru
      _
    // Predicated region
    $region38: #{action_predictor_bn.1} parent=1 // pred_check
      _
    $region39: #{action_predictor_bn.1} parent=1 // pred_check_branch
      %101 = sbr.rel (0) target = $region41
    $region40: #{action_predictor_bn.1} parent=1 // pred_region
      %103 = dma.done [#allocation9], 2048
    $region41: #{action_predictor_bn.1} parent=1 // pred_fallthru
      _
    // Predicated region
    $region42: #{action_predictor_bn.1} parent=1 // pred_check
      _
    $region43: #{action_predictor_bn.1} parent=1 // pred_check_branch
      %105 = sbr.rel (0) target = $region45
    $region44: #{action_predictor_bn.1} parent=1 // pred_region
      %107 = dma.done [#allocation9], 2048
    $region45: #{action_predictor_bn.1} parent=1 // pred_fallthru
      _
    // Predicated region
    $region46: #{action_predictor_bn.1} parent=1 // pred_check
      _
    $region47: #{action_predictor_bn.1} parent=1 // pred_check_branch
      %109 = sbr.rel (0) target = $region49
    $region48: #{action_predictor_bn.1} parent=1 // pred_region
      %111 = dma.done [#allocation12], 16
    $region49: #{action_predictor_bn.1} parent=1 // pred_fallthru
      _
    %v112 = vld [vmem:[#allocation7] sm:$0x1]
    %v113 = vld [vmem:[#allocation7 + $0x1] sm:$0x1]
    %v114 = vld [vmem:[#allocation7 + $0x2] sm:$0x1]
    %v115 = vld [vmem:[#allocation7 + $0x3] sm:$0x1]
    %v116 = vld [vmem:[#allocation7 + $0x4] sm:$0x1]
    %v117 = vld [vmem:[#allocation7 + $0x5] sm:$0x1]
    %v118 = vld [vmem:[#allocation2] sm:$0xff]
    %v119 = vld [vmem:[#allocation5] sm:$0xff]
    %v120 = vld [vmem:[#allocation5 + $0x8] sm:$0xff]
    %v121 = vld [vmem:[#allocation5 + $0x10] sm:$0xff]
    %v122 = vld [vmem:[#allocation5 + $0x18] sm:$0xff]
    %v123 = vperm.slane %v112, 0
    %vm124 = vcmask 261120
    %v126 = vsel %vm124, %v118, 0
    %128 = vmatpush.msra.mxu0 0.0
    %129 = vmatpush.msra.mxu0 0.0
    %130 = vmatpush.msra.mxu0 0.0
    %131 = vmatpush.msra.mxu0 0.0
    %132 = vmatpush.msra.mxu0 0.0
    %133 = vmatpush.msra.mxu0 0.0
    %134 = vmatpush.msra.mxu0 0.0
    %135 = vmatpush.msra.mxu0 0.0
    %136 = vmatpush.msra.mxu0 0.0
    %137 = vmatpush.msra.mxu0 0.0
    %138 = vmatpush.msra.mxu0 0.0
    %139 = vmatpush.msra.mxu0 0.0
    %140 = vmatpush.msra.mxu0 %v122
    %141 = vmatpush.msra.mxu0 %v121
    %142 = vmatpush.msra.mxu0 %v120
    %143 = vmatpush.msra.mxu0 %v119
    %144 = vmatmul.f32.gmra.mxu0 %v126
    %v145 = vpop.f32.mrf.mxu0
    %v146 = vadd.f32 %v123, %v145
    %147 = vdwg.mxu0
    %v148 = vrot.slane %v146, 4
    %v149 = vadd.f32 %v146, %v148
    %v150 = vrot.slane %v149, 2
    %v151 = vadd.f32 %v149, %v150
    %v152 = vrot.slane %v151, 1
    %v153 = vadd.f32 %v151, %v152
    %v154 = vmul.f32 %v153, 0.125
    %v155 = vmul.f32 %v146, %v146
    %v156 = vrot.slane %v155, 4
    %v157 = vadd.f32 %v155, %v156
    %v158 = vrot.slane %v157, 2
    %v159 = vadd.f32 %v157, %v158
    %v160 = vrot.slane %v159, 1
    %v161 = vadd.f32 %v159, %v160
    %v162 = vmul.f32 %v161, 0.125
    %v163 = vmul.f32 %v154, %v154
    %v164 = vsub.f32 %v162, %v163
    %v165 = vmax.f32 %v164, 0.0
    %v166 = vadd.f32 %v165, 1e-05
    %v167 = vrsqrt.pop %v166
    %v168 = vmul.f32 %v167, %v166
    %v169 = vmul.f32 %v168, %v167
    %v170 = vmul.f32 0.5, %v169
    %v171 = vsub.f32 1.5, %v170
    %v172 = vmul.f32 %v167, %v171
    %vm173 = vweird.f32 %v166
    %vm174 = vweird.f32 %v167
    %vm175 = vmor %vm173, %vm174
    %v176 = vsel %vm175, %v167, %v172
    %v177 = vmul.f32 %v113, %v176
    %v178 = vmul.f32 %v154, %v177
    %v179 = vsub.f32 %v114, %v178
    %v180 = vperm.slane %v177, 0
    %v181 = vmul.f32 %v146, %v180
    %v182 = vperm.slane %v179, 0
    %v183 = vadd.f32 %v181, %v182
    %v184 = vmax.f32 %v183, 0.0
    %v185 = vld [vmem:[#allocation8] sm:$0xff]
    %v186 = vld [vmem:[#allocation8 + $0x8] sm:$0xff]
    %v187 = vld [vmem:[#allocation8 + $0x10] sm:$0xff]
    %v188 = vld [vmem:[#allocation8 + $0x18] sm:$0xff]
    %v189 = vld [vmem:[#allocation8 + $0x20] sm:$0xff]
    %v190 = vld [vmem:[#allocation8 + $0x28] sm:$0xff]
    %v191 = vld [vmem:[#allocation8 + $0x30] sm:$0xff]
    %v192 = vld [vmem:[#allocation8 + $0x38] sm:$0xff]
    %v193 = vld [vmem:[#allocation8 + $0x40] sm:$0xff]
    %v194 = vld [vmem:[#allocation8 + $0x48] sm:$0xff]
    %v195 = vld [vmem:[#allocation8 + $0x50] sm:$0xff]
    %v196 = vld [vmem:[#allocation8 + $0x58] sm:$0xff]
    %v197 = vld [vmem:[#allocation8 + $0x60] sm:$0xff]
    %v198 = vld [vmem:[#allocation8 + $0x68] sm:$0xff]
    %v199 = vld [vmem:[#allocation8 + $0x70] sm:$0xff]
    %v200 = vld [vmem:[#allocation8 + $0x78] sm:$0xff]
    %v201 = vperm.slane %v115, 0
    %202 = vmatpush.msra.mxu0 %v200
    %203 = vmatpush.msra.mxu0 %v199
    %204 = vmatpush.msra.mxu0 %v198
    %205 = vmatpush.msra.mxu0 %v197
    %206 = vmatpush.msra.mxu0 %v196
    %207 = vmatpush.msra.mxu0 %v195
    %208 = vmatpush.msra.mxu0 %v194
    %209 = vmatpush.msra.mxu0 %v193
    %210 = vmatpush.msra.mxu0 %v192
    %211 = vmatpush.msra.mxu0 %v191
    %212 = vmatpush.msra.mxu0 %v190
    %213 = vmatpush.msra.mxu0 %v189
    %214 = vmatpush.msra.mxu0 %v188
    %215 = vmatpush.msra.mxu0 %v187
    %216 = vmatpush.msra.mxu0 %v186
    %217 = vmatpush.msra.mxu0 %v185
    %218 = vmatmul.f32.gmra.mxu0 %v184
    %v219 = vpop.f32.mrf.mxu0
    %v220 = vadd.f32 %v201, %v219
    %221 = vdwg.mxu0
    %v222 = vrot.slane %v220, 4
    %v223 = vadd.f32 %v220, %v222
    %v224 = vrot.slane %v223, 2
    %v225 = vadd.f32 %v223, %v224
    %v226 = vrot.slane %v225, 1
    %v227 = vadd.f32 %v225, %v226
    %v228 = vmul.f32 %v227, 0.125
    %v229 = vmul.f32 %v220, %v220
    %v230 = vrot.slane %v229, 4
    %v231 = vadd.f32 %v229, %v230
    %v232 = vrot.slane %v231, 2
    %v233 = vadd.f32 %v231, %v232
    %v234 = vrot.slane %v233, 1
    %v235 = vadd.f32 %v233, %v234
    %v236 = vmul.f32 %v235, 0.125
    %v237 = vmul.f32 %v228, %v228
    %v238 = vsub.f32 %v236, %v237
    %v239 = vmax.f32 %v238, 0.0
    %v240 = vadd.f32 %v239, 1e-05
    %v241 = vrsqrt.pop %v240
    %v242 = vmul.f32 %v241, %v240
    %v243 = vmul.f32 %v242, %v241
    %v244 = vmul.f32 0.5, %v243
    %v245 = vsub.f32 1.5, %v244
    %v246 = vmul.f32 %v241, %v245
    %vm247 = vweird.f32 %v240
    %vm248 = vweird.f32 %v241
    %vm249 = vmor %vm247, %vm248
    %v250 = vsel %vm249, %v241, %v246
    %v251 = vmul.f32 %v116, %v250
    %v252 = vmul.f32 %v228, %v251
    %v253 = vsub.f32 %v117, %v252
    %v254 = vperm.slane %v251, 0
    %v255 = vmul.f32 %v220, %v254
    %v256 = vperm.slane %v253, 0
    %v257 = vadd.f32 %v255, %v256
    %v258 = vmax.f32 %v257, 0.0
    %v259 = vld [vmem:[#allocation10] sm:$0xff]
    %v260 = vld [vmem:[#allocation10 + $0x8] sm:$0xff]
    %v261 = vld [vmem:[#allocation10 + $0x10] sm:$0xff]
    %v262 = vld [vmem:[#allocation10 + $0x18] sm:$0xff]
    %v263 = vld [vmem:[#allocation10 + $0x20] sm:$0xff]
    %v264 = vld [vmem:[#allocation10 + $0x28] sm:$0xff]
    %v265 = vld [vmem:[#allocation10 + $0x30] sm:$0xff]
    %v266 = vld [vmem:[#allocation10 + $0x38] sm:$0xff]
    %v267 = vld [vmem:[#allocation10 + $0x40] sm:$0xff]
    %v268 = vld [vmem:[#allocation10 + $0x48] sm:$0xff]
    %v269 = vld [vmem:[#allocation10 + $0x50] sm:$0xff]
    %v270 = vld [vmem:[#allocation10 + $0x58] sm:$0xff]
    %v271 = vld [vmem:[#allocation10 + $0x60] sm:$0xff]
    %v272 = vld [vmem:[#allocation10 + $0x68] sm:$0xff]
    %v273 = vld [vmem:[#allocation10 + $0x70] sm:$0xff]
    %v274 = vld [vmem:[#allocation10 + $0x78] sm:$0xff]
    %v275 = vld [vmem:[#allocation11] sm:$0x1]
    %v277 = vperm.slane %v275, 0
    %279 = vmatpush.msra.mxu0 %v274
    %280 = vmatpush.msra.mxu0 %v273
    %281 = vmatpush.msra.mxu0 %v272
    %282 = vmatpush.msra.mxu0 %v271
    %283 = vmatpush.msra.mxu0 %v270
    %284 = vmatpush.msra.mxu0 %v269
    %285 = vmatpush.msra.mxu0 %v268
    %286 = vmatpush.msra.mxu0 %v267
    %287 = vmatpush.msra.mxu0 %v266
    %288 = vmatpush.msra.mxu0 %v265
    %289 = vmatpush.msra.mxu0 %v264
    %290 = vmatpush.msra.mxu0 %v263
    %291 = vmatpush.msra.mxu0 %v262
    %292 = vmatpush.msra.mxu0 %v261
    %293 = vmatpush.msra.mxu0 %v260
    %294 = vmatpush.msra.mxu0 %v259
    %295 = vmatmul.f32.gmra.mxu0 %v258
    %v296 = vpop.f32.mrf.mxu0
    %v297 = vadd.f32 %v277, %v296
    %298 = vdwg.mxu0
    %v299 = vxor.u32 %v297, 2147483648
    %v300 = vmul.f32 %v299, 1.442695
    %v301 = vpow.pop %v300
    %v302 = vadd.f32 %v301, 1.0
    %v303 = vrcp.pop %v302
    %v304 = vmul.f32 %v302, %v303
    %v305 = vsub.f32 1.0, %v304
    %v306 = vmul.f32 %v303, %v305
    %v307 = vadd.f32 %v303, %v306
    %vm308 = vweird.f32 %v302
    %vm309 = vweird.f32 %v303
    %vm310 = vmor %vm308, %vm309
    %v311 = vsel %vm310, %v303, %v307
    %v312 = vand.u32 2147483647, %v302
    %vm313 = vcmp.eq.f32.partialorder %v312, 8.507059e+37
    %v314 = vand.u32 %v302, 2147483648
    %v315 = vor.u32 1.1754944e-38, %v314
    %v316 = vsel %vm313, %v315, %v311
    %v317 = vmul.f32 1.0, %v316
    %vm318 = vcmask 130048
    %319 = vst.msk [vmem:[#allocation13] sm:$0xff] %vm318, %v317
    // Predicated region
    $region50: #{action_predictor_bn.1} parent=1 // pred_check
      _
    $region51: #{action_predictor_bn.1} parent=1 // pred_check_branch
      %321 = sbr.rel (0) target = $region53
    $region52: #{action_predictor_bn.1} parent=1 // pred_region
      %323 = vsyncadd [#allocation4], 0
      %s325 = sshll.u32 [#allocation13], 4
      %s326 = int_to_ptr.vmem [resolvable:$true] %s325
      %s327 = sshll.u32 %s6, 4
      %s328 = int_to_ptr.hbm [resolvable:$true] %s327
      %330 = dma.vmem_to_hbm [thread:$0]  %s326, 128, %s328, [#allocation4]
    $region53: #{action_predictor_bn.1} parent=1 // pred_fallthru
      _
    // Predicated region
    $region54: #{action_predictor_bn.1} parent=1 // pred_check
      _
    $region55: #{action_predictor_bn.1} parent=1 // pred_check_branch
      %332 = sbr.rel (0) target = $region57
    $region56: #{action_predictor_bn.1} parent=1 // pred_region
      %334 = dma.done [#allocation4], 128
    $region57: #{action_predictor_bn.1} parent=1 // pred_fallthru
      _
    %335 = vsyncpa [#allocation3], 1
    %336 = vsyncpa [#allocation6], 1
    %337 = vsyncpa [#allocation9], 1
    %338 = vsyncpa [#allocation12], 1
    %339 = vsyncpa [#allocation4], 1

</llo_original>
